<compile_context>
chip_gen: v6e
topology: v6e:2x2x1
jax: 0.10.0
libtpu: 0.0.40
codegen_flags: <defaults>
</compile_context>

<pallas_src>
import jax
import jax.numpy as jnp
from jax.experimental import pallas as pl
from jax.experimental.pallas import tpu as pltpu


def soft_attention_kernel(lat_ref, w_ref, result_ref, scores_ref):
    # Per grid step (one batch tile of TB rows):
    #   lat_ref    : [M, TB, L]  all latents (m = 0 is the agent latent),
    #                            batch rows dense in sublanes, L in lanes
    #   w_ref      : [L, 3E]     fused [Ws | Wt | Wc]
    #   result_ref : [TB, E]     lane-dense
    #   scores_ref : [TB, M]
    M = lat_ref.shape[0]
    E = result_ref.shape[1]

    w = w_ref[...]                                                   # [L, 3E]

    # M matmuls sharing one fused RHS: [TB, L] x [L, 3E] -> [TB, 3E], f32 acc.
    projs = [jnp.dot(lat_ref[m], w, preferred_element_type=jnp.float32)
             for m in range(M)]

    # q = agent @ Ws  (agent latent is slab m == 0 of all_latents).
    q = projs[0][:, :E]                                              # [TB, E]

    # scores[:, m] = <(lat_m @ Wt), q>  per batch row (XLU lane reduce).
    s = jnp.concatenate(
        [jnp.sum(projs[m][:, E:2 * E] * q, axis=-1, keepdims=True)
         for m in range(M)],
        axis=-1)                                                     # [TB, M]

    # Numerically-stable softmax over M, in f32 (matches F.softmax(dim=-1)).
    s_max = jnp.max(s, axis=-1, keepdims=True)                       # [TB, 1]
    e = jnp.exp(s - s_max)                                           # [TB, M]
    p = e / jnp.sum(e, axis=-1, keepdims=True)                       # [TB, M]

    # result = sum_m p[:, m] * (lat_m @ Wc)   (unrolled; M is small).
    res = p[:, 0:1] * projs[0][:, 2 * E:]
    for m in range(1, M):
        res = res + p[:, m:m + 1] * projs[m][:, 2 * E:]              # [TB, E]

    result_ref[...] = res.astype(result_ref.dtype)
    scores_ref[...] = p.astype(scores_ref.dtype)


def soft_attention_head(agent_latent, opponent_latents, ws, wt, wc, *, batch_tile=256):
    """agent_latent: [B, L], opponent_latents: [B, N, L], ws/wt/wc: [L, E]
    (nn.Linear weights pre-transposed so the kernel computes x @ W).

    Returns (result [B, E], scores [B, N+1])."""
    B, L = agent_latent.shape
    _, N, _ = opponent_latents.shape
    M = N + 1
    E = ws.shape[1]
    dtype = agent_latent.dtype

    # Batch tile: multiple of 8 sublanes (f32), capped by the (padded) batch.
    tb = max(8, min(batch_tile, pl.cdiv(B, 8) * 8))
    b_pad = pl.cdiv(B, tb) * tb

    # Glue (pure JAX, layout plumbing): agent latent concatenated in slot m=0,
    # then transposed to [M, B, L] so each m-slab is a dense [B, L] matmul LHS,
    # and zero-padded along batch (padded rows produce finite 1/M scores and
    # zero results, sliced away below).
    all_latents = jnp.concatenate(
        [agent_latent[:, None, :], opponent_latents], axis=1)        # [B, M, L]
    lat_mbl = jnp.transpose(all_latents, (1, 0, 2))                  # [M, B, L]
    if b_pad != B:
        lat_mbl = jnp.pad(lat_mbl, ((0, 0), (0, b_pad - B), (0, 0)))

    # Fuse Ws|Wt|Wc into a single MXU RHS.
    w_fused = jnp.concatenate([ws, wt, wc], axis=1)                  # [L, 3E]

    result_p, scores_p = pl.pallas_call(
        soft_attention_kernel,
        grid=(b_pad // tb,),
        in_specs=[
            pl.BlockSpec((M, tb, L), lambda i: (0, i, 0)),   # latent slab tile
            pl.BlockSpec((L, 3 * E), lambda i: (0, 0)),      # fused weight (resident)
        ],
        out_specs=(
            pl.BlockSpec((tb, E), lambda i: (i, 0)),         # lane-dense result
            pl.BlockSpec((tb, M), lambda i: (i, 0)),         # scores
        ),
        out_shape=(
            jax.ShapeDtypeStruct((b_pad, E), dtype),
            jax.ShapeDtypeStruct((b_pad, M), dtype),
        ),
        compiler_params=pltpu.CompilerParams(
            dimension_semantics=("parallel",)),               # megacore-shardable
    )(lat_mbl, w_fused)

    return result_p[:B], scores_p[:B]


def _reference(agent_latent, opponent_latents, ws, wt, wc):
    all_lat = jnp.concatenate([agent_latent[:, None, :], opponent_latents], axis=1)
    q = agent_latent @ ws
    s = jax.nn.softmax(jnp.einsum("bme,be->bm", all_lat @ wt, q), axis=-1)
    r = jnp.einsum("bm,bme->be", s, all_lat @ wc)
    return r, s


if __name__ == "__main__":
    B, N, L, E = 2, 3, 32, 32  # batch, num opponents, latent_dim, embed_dim

    key = jax.random.PRNGKey(0)
    k1, k2, k3, k4, k5 = jax.random.split(key, 5)

    # Deterministic xavier_normal_ init: std = sqrt(2 / (fan_in + fan_out)).
    std = (2.0 / (L + E)) ** 0.5
    ws = (jax.random.normal(k1, (E, L), jnp.float32) * std).T   # [L, E]
    wt = (jax.random.normal(k2, (E, L), jnp.float32) * std).T   # [L, E]
    wc = (jax.random.normal(k3, (E, L), jnp.float32) * std).T   # [L, E]

    agent_latent = jax.random.normal(k4, (B, L), jnp.float32)
    opponent_latents = jax.random.normal(k5, (B, N, L), jnp.float32)

    result, scores = soft_attention_head(agent_latent, opponent_latents, ws, wt, wc)
    jax.block_until_ready((result, scores))

    r_ref, s_ref = _reference(agent_latent, opponent_latents, ws, wt, wc)
    assert result.shape == (B, E) and scores.shape == (B, N + 1)
    assert jnp.allclose(result, r_ref, atol=1e-5), "result mismatch"
    assert jnp.allclose(scores, s_ref, atol=1e-5), "scores mismatch"

    # Second check exercising batch padding + a multi-step grid (B not a
    # multiple of the tile, batch_tile forces >1 grid step).
    B2 = 37
    k6, k7 = jax.random.split(jax.random.PRNGKey(1), 2)
    agent2 = jax.random.normal(k6, (B2, L), jnp.float32)
    opp2 = jax.random.normal(k7, (B2, N, L), jnp.float32)
    res2, sc2 = soft_attention_head(agent2, opp2, ws, wt, wc, batch_tile=16)
    jax.block_until_ready((res2, sc2))
    r2_ref, s2_ref = _reference(agent2, opp2, ws, wt, wc)
    assert jnp.allclose(res2, r2_ref, atol=1e-5), "tiled result mismatch"
    assert jnp.allclose(sc2, s2_ref, atol=1e-5), "tiled scores mismatch"

    print("KERNEL_OK")
</pallas_src>

<mosaic_0001>
module attributes {stable_mosaic.version = 11 : i64} {
  func.func @soft_attention_kernel(%arg0: i32, %arg1: memref<4x8x32xf32, #tpu.memory_space<vmem>>, %arg2: memref<32x96xf32, #tpu.memory_space<vmem>>, %arg3: memref<8x32xf32, #tpu.memory_space<vmem>>, %arg4: memref<8x4xf32, #tpu.memory_space<vmem>>) attributes {dimension_semantics = [#tpu.dimension_semantics<parallel>], iteration_bounds = array<i64: 1>, scalar_prefetch = 0 : i64, scratch_operands = 0 : i64, tpu.core_type = #tpu.core_type<tc>, window_params = [{transform_indices = @transform_0, window_bounds = array<i64: 4, 8, 32>}, {pipeline_mode = #tpu.pipeline_mode<synchronous>, transform_indices = @transform_1, window_bounds = array<i64: 32, 96>}, {transform_indices = @transform_2, window_bounds = array<i64: 8, 32>}, {transform_indices = @transform_3, window_bounds = array<i64: 8, 4>}]} {
    %c0 = arith.constant 0 : index
    %c0_0 = arith.constant 0 : index
    %0 = vector.load %arg2[%c0, %c0_0] : memref<32x96xf32, #tpu.memory_space<vmem>>, vector<32x96xf32>
    %c0_1 = arith.constant 0 : index
    %c0_2 = arith.constant 0 : index
    %c0_3 = arith.constant 0 : index
    %1 = vector.load %arg1[%c0_1, %c0_2, %c0_3] : memref<4x8x32xf32, #tpu.memory_space<vmem>>, vector<1x8x32xf32>
    %2 = vector.shape_cast %1 : vector<1x8x32xf32> to vector<8x32xf32>
    %cst = arith.constant dense<0.000000e+00> : vector<8x96xf32>
    %3 = tpu.matmul %2, %0, %cst {dimension_numbers = #tpu.dot_dimension_numbers<[1], [0], [0], [1], [0, 0, 1, 1], [], []>} : vector<8x32xf32>, vector<32x96xf32>, vector<8x96xf32> -> vector<8x96xf32>
    %c1 = arith.constant 1 : index
    %c0_4 = arith.constant 0 : index
    %c0_5 = arith.constant 0 : index
    %4 = vector.load %arg1[%c1, %c0_4, %c0_5] : memref<4x8x32xf32, #tpu.memory_space<vmem>>, vector<1x8x32xf32>
    %5 = vector.shape_cast %4 : vector<1x8x32xf32> to vector<8x32xf32>
    %cst_6 = arith.constant dense<0.000000e+00> : vector<8x96xf32>
    %6 = tpu.matmul %5, %0, %cst_6 {dimension_numbers = #tpu.dot_dimension_numbers<[1], [0], [0], [1], [0, 0, 1, 1], [], []>} : vector<8x32xf32>, vector<32x96xf32>, vector<8x96xf32> -> vector<8x96xf32>
    %c2 = arith.constant 2 : index
    %c0_7 = arith.constant 0 : index
    %c0_8 = arith.constant 0 : index
    %7 = vector.load %arg1[%c2, %c0_7, %c0_8] : memref<4x8x32xf32, #tpu.memory_space<vmem>>, vector<1x8x32xf32>
    %8 = vector.shape_cast %7 : vector<1x8x32xf32> to vector<8x32xf32>
    %cst_9 = arith.constant dense<0.000000e+00> : vector<8x96xf32>
    %9 = tpu.matmul %8, %0, %cst_9 {dimension_numbers = #tpu.dot_dimension_numbers<[1], [0], [0], [1], [0, 0, 1, 1], [], []>} : vector<8x32xf32>, vector<32x96xf32>, vector<8x96xf32> -> vector<8x96xf32>
    %c3 = arith.constant 3 : index
    %c0_10 = arith.constant 0 : index
    %c0_11 = arith.constant 0 : index
    %10 = vector.load %arg1[%c3, %c0_10, %c0_11] : memref<4x8x32xf32, #tpu.memory_space<vmem>>, vector<1x8x32xf32>
    %11 = vector.shape_cast %10 : vector<1x8x32xf32> to vector<8x32xf32>
    %cst_12 = arith.constant dense<0.000000e+00> : vector<8x96xf32>
    %12 = tpu.matmul %11, %0, %cst_12 {dimension_numbers = #tpu.dot_dimension_numbers<[1], [0], [0], [1], [0, 0, 1, 1], [], []>} : vector<8x32xf32>, vector<32x96xf32>, vector<8x96xf32> -> vector<8x96xf32>
    %13 = vector.extract_strided_slice %3 {offsets = [0, 0], sizes = [8, 32], strides = [1, 1]} : vector<8x96xf32> to vector<8x32xf32>
    %14 = vector.extract_strided_slice %3 {offsets = [0, 32], sizes = [8, 32], strides = [1, 1]} : vector<8x96xf32> to vector<8x32xf32>
    %15 = arith.mulf %14, %13 : vector<8x32xf32>
    %cst_13 = arith.constant dense<0.000000e+00> : vector<8xf32>
    %16 = vector.multi_reduction <add>, %15, %cst_13 [1] : vector<8x32xf32> to vector<8xf32>
    %17 = vector.shape_cast %16 : vector<8xf32> to vector<8x1xf32>
    %18 = vector.extract_strided_slice %6 {offsets = [0, 32], sizes = [8, 32], strides = [1, 1]} : vector<8x96xf32> to vector<8x32xf32>
    %19 = arith.mulf %18, %13 : vector<8x32xf32>
    %cst_14 = arith.constant dense<0.000000e+00> : vector<8xf32>
    %20 = vector.multi_reduction <add>, %19, %cst_14 [1] : vector<8x32xf32> to vector<8xf32>
    %21 = vector.shape_cast %20 : vector<8xf32> to vector<8x1xf32>
    %22 = vector.extract_strided_slice %9 {offsets = [0, 32], sizes = [8, 32], strides = [1, 1]} : vector<8x96xf32> to vector<8x32xf32>
    %23 = arith.mulf %22, %13 : vector<8x32xf32>
    %cst_15 = arith.constant dense<0.000000e+00> : vector<8xf32>
    %24 = vector.multi_reduction <add>, %23, %cst_15 [1] : vector<8x32xf32> to vector<8xf32>
    %25 = vector.shape_cast %24 : vector<8xf32> to vector<8x1xf32>
    %26 = vector.extract_strided_slice %12 {offsets = [0, 32], sizes = [8, 32], strides = [1, 1]} : vector<8x96xf32> to vector<8x32xf32>
    %27 = arith.mulf %26, %13 : vector<8x32xf32>
    %cst_16 = arith.constant dense<0.000000e+00> : vector<8xf32>
    %28 = vector.multi_reduction <add>, %27, %cst_16 [1] : vector<8x32xf32> to vector<8xf32>
    %29 = vector.shape_cast %28 : vector<8xf32> to vector<8x1xf32>
    %30 = tpu.concatenate %17, %21, %25, %29 in 1 : vector<8x1xf32>, vector<8x1xf32>, vector<8x1xf32>, vector<8x1xf32> -> vector<8x4xf32>
    %cst_17 = arith.constant dense<0xFF800000> : vector<8xf32>
    %31 = vector.multi_reduction <maximumf>, %30, %cst_17 [1] : vector<8x4xf32> to vector<8xf32>
    %32 = vector.shape_cast %31 : vector<8xf32> to vector<8x1xf32>
    %33 = vector.broadcast %32 : vector<8x1xf32> to vector<8x4xf32>
    %34 = arith.subf %30, %33 : vector<8x4xf32>
    %35 = math.exp %34 : vector<8x4xf32>
    %cst_18 = arith.constant dense<0.000000e+00> : vector<8xf32>
    %36 = vector.multi_reduction <add>, %35, %cst_18 [1] : vector<8x4xf32> to vector<8xf32>
    %37 = vector.shape_cast %36 : vector<8xf32> to vector<8x1xf32>
    %38 = vector.broadcast %37 : vector<8x1xf32> to vector<8x4xf32>
    %39 = arith.divf %35, %38 : vector<8x4xf32>
    %40 = vector.extract_strided_slice %39 {offsets = [0, 0], sizes = [8, 1], strides = [1, 1]} : vector<8x4xf32> to vector<8x1xf32>
    %41 = vector.extract_strided_slice %3 {offsets = [0, 64], sizes = [8, 32], strides = [1, 1]} : vector<8x96xf32> to vector<8x32xf32>
    %42 = vector.broadcast %40 : vector<8x1xf32> to vector<8x32xf32>
    %43 = arith.mulf %42, %41 : vector<8x32xf32>
    %44 = vector.extract_strided_slice %39 {offsets = [0, 1], sizes = [8, 1], strides = [1, 1]} : vector<8x4xf32> to vector<8x1xf32>
    %45 = vector.extract_strided_slice %6 {offsets = [0, 64], sizes = [8, 32], strides = [1, 1]} : vector<8x96xf32> to vector<8x32xf32>
    %46 = vector.broadcast %44 : vector<8x1xf32> to vector<8x32xf32>
    %47 = arith.mulf %46, %45 : vector<8x32xf32>
    %48 = arith.addf %43, %47 : vector<8x32xf32>
    %49 = vector.extract_strided_slice %39 {offsets = [0, 2], sizes = [8, 1], strides = [1, 1]} : vector<8x4xf32> to vector<8x1xf32>
    %50 = vector.extract_strided_slice %9 {offsets = [0, 64], sizes = [8, 32], strides = [1, 1]} : vector<8x96xf32> to vector<8x32xf32>
    %51 = vector.broadcast %49 : vector<8x1xf32> to vector<8x32xf32>
    %52 = arith.mulf %51, %50 : vector<8x32xf32>
    %53 = arith.addf %48, %52 : vector<8x32xf32>
    %54 = vector.extract_strided_slice %39 {offsets = [0, 3], sizes = [8, 1], strides = [1, 1]} : vector<8x4xf32> to vector<8x1xf32>
    %55 = vector.extract_strided_slice %12 {offsets = [0, 64], sizes = [8, 32], strides = [1, 1]} : vector<8x96xf32> to vector<8x32xf32>
    %56 = vector.broadcast %54 : vector<8x1xf32> to vector<8x32xf32>
    %57 = arith.mulf %56, %55 : vector<8x32xf32>
    %58 = arith.addf %53, %57 : vector<8x32xf32>
    %c0_19 = arith.constant 0 : index
    %c0_20 = arith.constant 0 : index
    %59 = vector.load %arg3[%c0_19, %c0_20] : memref<8x32xf32, #tpu.memory_space<vmem>>, vector<8x32xf32>
    tpu.vector_store %arg3[%c0_19, %c0_20], %58 {strides = array<i32>} : memref<8x32xf32, #tpu.memory_space<vmem>>, vector<8x32xf32>,
    %c0_21 = arith.constant 0 : index
    %c0_22 = arith.constant 0 : index
    %60 = vector.load %arg4[%c0_21, %c0_22] : memref<8x4xf32, #tpu.memory_space<vmem>>, vector<8x4xf32>
    tpu.vector_store %arg4[%c0_21, %c0_22], %39 {strides = array<i32>} : memref<8x4xf32, #tpu.memory_space<vmem>>, vector<8x4xf32>,
    return
  }
  func.func @transform_0(%arg0: i32) -> (i32, i32, i32) {
    %c0_i32 = arith.constant 0 : i32
    %c0_i32_0 = arith.constant 0 : i32
    %c0_i32_1 = arith.constant 0 : i32
    return %c0_i32, %arg0, %c0_i32_0 : i32, i32, i32
  }
  func.func @transform_1(%arg0: i32) -> (i32, i32) {
    %c0_i32 = arith.constant 0 : i32
    %c0_i32_0 = arith.constant 0 : i32
    %c0_i32_1 = arith.constant 0 : i32
    return %c0_i32, %c0_i32_0 : i32, i32
  }
  func.func @transform_2(%arg0: i32) -> (i32, i32) {
    %c0_i32 = arith.constant 0 : i32
    %c0_i32_0 = arith.constant 0 : i32
    return %arg0, %c0_i32 : i32, i32
  }
  func.func @transform_3(%arg0: i32) -> (i32, i32) {
    %c0_i32 = arith.constant 0 : i32
    %c0_i32_0 = arith.constant 0 : i32
    return %arg0, %c0_i32 : i32, i32
  }
}

</mosaic_0001>

<llo_original>
// kernel: tpu_custom_call.1
$region0: #{tpu_custom_call.1}
  #allocation0 [shape = 'u32[]', space=smem, size = 0x4, offset = 0x4, fixed_abs, tag = 'smem constant byte address 0x4 - core index']
  #allocation1 [shape = 'u32[144,128]{1,0:T(1,128)}', space=vmem, size = 0x12000, scoped, tag = 'internal scratch']
  %s0 = inlined_call_operand.hbm [shape: f32[4,8,32], index: 0, kind: input, shape index: {}]
  %s1 = inlined_call_operand.hbm [shape: f32[32,96], index: 1, kind: input, shape index: {}]
  %s2 = inlined_call_operand.hbm [shape: f32[8,32], index: 2, kind: output, shape index: {0}]
  %s3 = inlined_call_operand.vmem [shape: f32[8,4], index: 3, kind: output, shape index: {1}]
  %4 = xla_tuple %s2, %s3
  %s5 = sld [smem:[#allocation0]]
  $region34: #{tpu_custom_call.1} parent=0
    _
  %s7 = ssub.s32 1, %s5
  %s8 = scalar_select 0, %s7, %s5
  $region1: #{tpu_custom_call.1} parent=0
    #allocation2 [shape = 'u8[16384]{0}', space=vmem, size = 0x4000, scoped, tag = 'input window, operand 0, single buffered']
    #allocation3 [shape = 's32[1]{0}', space=sflag, size = 0x4, scoped, tag = 'scoped memory for tpu_custom_call.1']
    #allocation4 [shape = 's32[1]{0}', space=sflag, size = 0x4, scoped, tag = 'scoped memory for tpu_custom_call.1']
    #allocation5 [shape = 'u8[16384]{0}', space=vmem, size = 0x4000, scoped, tag = 'input window, operand 1, single buffered']
    #allocation6 [shape = 's32[1]{0}', space=sflag, size = 0x4, scoped, tag = 'scoped memory for tpu_custom_call.1']
    #allocation7 [shape = 'u8[4096]{0}', space=vmem, size = 0x1000, scoped, tag = 'output window, operand 0, single buffered']
    %9 = vsyncpa [#allocation3], 0
    %10 = vsyncpa [#allocation6], 0
    %11 = vsyncpa [#allocation4], 0
    // Predicated region
    $region2: #{tpu_custom_call.1} parent=1 // pred_check
      _
    $region3: #{tpu_custom_call.1} parent=1 // pred_check_branch
      %13 = sbr.rel (0) target = $region5
    $region4: #{tpu_custom_call.1} parent=1 // pred_region
      %s15 = ssub.s32 512, 512
      %16 = vsyncadd [#allocation3], %s15
      %s17 = sshll.u32 [#allocation2], 4
      %s18 = int_to_ptr.vmem [resolvable:$true] %s17
      %23 = dma.hbm_to_vmem [thread:$0]  %s0, 512, %s18, [#allocation3], 128, 128, 8
    $region5: #{tpu_custom_call.1} parent=1 // pred_fallthru
      _
    // Predicated region
    $region6: #{tpu_custom_call.1} parent=1 // pred_check
      _
    $region7: #{tpu_custom_call.1} parent=1 // pred_check_branch
      %25 = sbr.rel (0) target = $region9
    $region8: #{tpu_custom_call.1} parent=1 // pred_region
      %s27 = ssub.s32 512, 512
      %28 = vsyncadd [#allocation6], %s27
      %s29 = sshll.u32 [#allocation5], 4
      %s30 = int_to_ptr.vmem [resolvable:$true] %s29
      %35 = dma.hbm_to_vmem [thread:$0]  %s1, 512, %s30, [#allocation6], 128, 128, 8
    $region9: #{tpu_custom_call.1} parent=1 // pred_fallthru
      _
    // Predicated region
    $region10: #{tpu_custom_call.1} parent=1 // pred_check
      _
    $region11: #{tpu_custom_call.1} parent=1 // pred_check_branch
      %37 = sbr.rel (0) target = $region13
    $region12: #{tpu_custom_call.1} parent=1 // pred_region
      %38 = dma.done [#allocation3], 512
    $region13: #{tpu_custom_call.1} parent=1 // pred_fallthru
      _
    // Predicated region
    $region14: #{tpu_custom_call.1} parent=1 // pred_check
      _
    $region15: #{tpu_custom_call.1} parent=1 // pred_check_branch
      %40 = sbr.rel (0) target = $region17
    $region16: #{tpu_custom_call.1} parent=1 // pred_region
      %41 = dma.done [#allocation6], 512
    $region17: #{tpu_custom_call.1} parent=1 // pred_fallthru
      _
    %v42 = vld [vmem:[#allocation5] sm:$0xff]
    %v43 = vld [vmem:[#allocation5 + $0x8] sm:$0xff]
    %v44 = vld [vmem:[#allocation5 + $0x10] sm:$0xff]
    %v45 = vld [vmem:[#allocation5 + $0x18] sm:$0xff]
    %v46 = vld [vmem:[#allocation2] sm:$0xff]
    %vm47 = vcmask 261120
    %v49 = vsel %vm47, %v46, 0
    %51 = vmatprep.subr.mxu0 0.0
    %52 = vmatpush1.msra.mxu0 0.0
    %53 = vmatprep.subr.mxu0 0.0
    %54 = vmatpush1.msra.mxu0 0.0
    %55 = vmatprep.subr.mxu0 0.0
    %56 = vmatpush1.msra.mxu0 0.0
    %57 = vmatprep.subr.mxu0 0.0
    %58 = vmatpush1.msra.mxu0 0.0
    %59 = vmatprep.subr.mxu0 0.0
    %60 = vmatpush1.msra.mxu0 0.0
    %61 = vmatprep.subr.mxu0 0.0
    %62 = vmatpush1.msra.mxu0 0.0
    %63 = vmatprep.subr.mxu0 0.0
    %64 = vmatpush1.msra.mxu0 0.0
    %65 = vmatprep.subr.mxu0 0.0
    %66 = vmatpush1.msra.mxu0 0.0
    %67 = vmatprep.subr.mxu0 0.0
    %68 = vmatpush1.msra.mxu0 0.0
    %69 = vmatprep.subr.mxu0 0.0
    %70 = vmatpush1.msra.mxu0 0.0
    %71 = vmatprep.subr.mxu0 0.0
    %72 = vmatpush1.msra.mxu0 0.0
    %73 = vmatprep.subr.mxu0 0.0
    %74 = vmatpush1.msra.mxu0 0.0
    %75 = vmatprep.subr.mxu0 0.0
    %76 = vmatpush1.msra.mxu0 %v45
    %77 = vmatprep.subr.mxu0 0.0
    %78 = vmatpush1.msra.mxu0 %v44
    %79 = vmatprep.subr.mxu0 0.0
    %80 = vmatpush1.msra.mxu0 %v43
    %81 = vmatprep.subr.mxu0 0.0
    %82 = vmatpush1.msra.mxu0 %v42
    %83 = vmatprep.subr.mxu0 0.0
    %84 = vmatpush2.msra.mxu0 0.0
    %85 = vmatprep.subr.mxu0 0.0
    %86 = vmatpush2.msra.mxu0 0.0
    %87 = vmatprep.subr.mxu0 0.0
    %88 = vmatpush2.msra.mxu0 0.0
    %89 = vmatprep.subr.mxu0 0.0
    %90 = vmatpush2.msra.mxu0 0.0
    %91 = vmatprep.subr.mxu0 0.0
    %92 = vmatpush2.msra.mxu0 0.0
    %93 = vmatprep.subr.mxu0 0.0
    %94 = vmatpush2.msra.mxu0 0.0
    %95 = vmatprep.subr.mxu0 0.0
    %96 = vmatpush2.msra.mxu0 0.0
    %97 = vmatprep.subr.mxu0 0.0
    %98 = vmatpush2.msra.mxu0 0.0
    %99 = vmatprep.subr.mxu0 0.0
    %100 = vmatpush2.msra.mxu0 0.0
    %101 = vmatprep.subr.mxu0 0.0
    %102 = vmatpush2.msra.mxu0 0.0
    %103 = vmatprep.subr.mxu0 0.0
    %104 = vmatpush2.msra.mxu0 0.0
    %105 = vmatprep.subr.mxu0 0.0
    %106 = vmatpush2.msra.mxu0 0.0
    %107 = vmatprep.subr.mxu0 0.0
    %108 = vmatpush2.msra.mxu0 0.0
    %109 = vmatprep.subr.mxu0 0.0
    %110 = vmatpush2.msra.mxu0 0.0
    %111 = vmatprep.subr.mxu0 0.0
    %112 = vmatpush2.msra.mxu0 0.0
    %113 = vmatprep.subr.mxu0 0.0
    %114 = vmatpush2.msra.mxu0 0.0
    %115 = vmatprep.mubr.f32.mxu0 0.0
    %116 = vmatmul.mubr.f32.gmra.mxu0 %v49
    %v117 = vpop.f32.mrf.mxu0
    %v118 = vadd.f32 0.0, %v117
    %v119 = vpop.f32.mrf.mxu0
    %120 = vdwg.mxu0
    %s121 = scalar_lea.vmem [#allocation2], 8
    %v122 = vld [vmem:[%s121] sm:$0xff]
    %v124 = vsel %vm47, %v122, 0
    %126 = vmatprep.subr.mxu0 0.0
    %127 = vmatpush1.msra.mxu0 0.0
    %128 = vmatprep.subr.mxu0 0.0
    %129 = vmatpush1.msra.mxu0 0.0
    %130 = vmatprep.subr.mxu0 0.0
    %131 = vmatpush1.msra.mxu0 0.0
    %132 = vmatprep.subr.mxu0 0.0
    %133 = vmatpush1.msra.mxu0 0.0
    %134 = vmatprep.subr.mxu0 0.0
    %135 = vmatpush1.msra.mxu0 0.0
    %136 = vmatprep.subr.mxu0 0.0
    %137 = vmatpush1.msra.mxu0 0.0
    %138 = vmatprep.subr.mxu0 0.0
    %139 = vmatpush1.msra.mxu0 0.0
    %140 = vmatprep.subr.mxu0 0.0
    %141 = vmatpush1.msra.mxu0 0.0
    %142 = vmatprep.subr.mxu0 0.0
    %143 = vmatpush1.msra.mxu0 0.0
    %144 = vmatprep.subr.mxu0 0.0
    %145 = vmatpush1.msra.mxu0 0.0
    %146 = vmatprep.subr.mxu0 0.0
    %147 = vmatpush1.msra.mxu0 0.0
    %148 = vmatprep.subr.mxu0 0.0
    %149 = vmatpush1.msra.mxu0 0.0
    %150 = vmatprep.subr.mxu0 0.0
    %151 = vmatpush1.msra.mxu0 %v45
    %152 = vmatprep.subr.mxu0 0.0
    %153 = vmatpush1.msra.mxu0 %v44
    %154 = vmatprep.subr.mxu0 0.0
    %155 = vmatpush1.msra.mxu0 %v43
    %156 = vmatprep.subr.mxu0 0.0
    %157 = vmatpush1.msra.mxu0 %v42
    %158 = vmatprep.subr.mxu0 0.0
    %159 = vmatpush2.msra.mxu0 0.0
    %160 = vmatprep.subr.mxu0 0.0
    %161 = vmatpush2.msra.mxu0 0.0
    %162 = vmatprep.subr.mxu0 0.0
    %163 = vmatpush2.msra.mxu0 0.0
    %164 = vmatprep.subr.mxu0 0.0
    %165 = vmatpush2.msra.mxu0 0.0
    %166 = vmatprep.subr.mxu0 0.0
    %167 = vmatpush2.msra.mxu0 0.0
    %168 = vmatprep.subr.mxu0 0.0
    %169 = vmatpush2.msra.mxu0 0.0
    %170 = vmatprep.subr.mxu0 0.0
    %171 = vmatpush2.msra.mxu0 0.0
    %172 = vmatprep.subr.mxu0 0.0
    %173 = vmatpush2.msra.mxu0 0.0
    %174 = vmatprep.subr.mxu0 0.0
    %175 = vmatpush2.msra.mxu0 0.0
    %176 = vmatprep.subr.mxu0 0.0
    %177 = vmatpush2.msra.mxu0 0.0
    %178 = vmatprep.subr.mxu0 0.0
    %179 = vmatpush2.msra.mxu0 0.0
    %180 = vmatprep.subr.mxu0 0.0
    %181 = vmatpush2.msra.mxu0 0.0
    %182 = vmatprep.subr.mxu0 0.0
    %183 = vmatpush2.msra.mxu0 0.0
    %184 = vmatprep.subr.mxu0 0.0
    %185 = vmatpush2.msra.mxu0 0.0
    %186 = vmatprep.subr.mxu0 0.0
    %187 = vmatpush2.msra.mxu0 0.0
    %188 = vmatprep.subr.mxu0 0.0
    %189 = vmatpush2.msra.mxu0 0.0
    %190 = vmatprep.mubr.f32.mxu0 0.0
    %191 = vmatmul.mubr.f32.gmra.mxu0 %v124
    %v192 = vpop.f32.mrf.mxu0
    %v193 = vadd.f32 0.0, %v192
    %v194 = vpop.f32.mrf.mxu0
    %195 = vdwg.mxu0
    %s196 = scalar_lea.vmem [#allocation2], 16
    %v197 = vld [vmem:[%s196] sm:$0xff]
    %v199 = vsel %vm47, %v197, 0
    %201 = vmatprep.subr.mxu0 0.0
    %202 = vmatpush1.msra.mxu0 0.0
    %203 = vmatprep.subr.mxu0 0.0
    %204 = vmatpush1.msra.mxu0 0.0
    %205 = vmatprep.subr.mxu0 0.0
    %206 = vmatpush1.msra.mxu0 0.0
    %207 = vmatprep.subr.mxu0 0.0
    %208 = vmatpush1.msra.mxu0 0.0
    %209 = vmatprep.subr.mxu0 0.0
    %210 = vmatpush1.msra.mxu0 0.0
    %211 = vmatprep.subr.mxu0 0.0
    %212 = vmatpush1.msra.mxu0 0.0
    %213 = vmatprep.subr.mxu0 0.0
    %214 = vmatpush1.msra.mxu0 0.0
    %215 = vmatprep.subr.mxu0 0.0
    %216 = vmatpush1.msra.mxu0 0.0
    %217 = vmatprep.subr.mxu0 0.0
    %218 = vmatpush1.msra.mxu0 0.0
    %219 = vmatprep.subr.mxu0 0.0
    %220 = vmatpush1.msra.mxu0 0.0
    %221 = vmatprep.subr.mxu0 0.0
    %222 = vmatpush1.msra.mxu0 0.0
    %223 = vmatprep.subr.mxu0 0.0
    %224 = vmatpush1.msra.mxu0 0.0
    %225 = vmatprep.subr.mxu0 0.0
    %226 = vmatpush1.msra.mxu0 %v45
    %227 = vmatprep.subr.mxu0 0.0
    %228 = vmatpush1.msra.mxu0 %v44
    %229 = vmatprep.subr.mxu0 0.0
    %230 = vmatpush1.msra.mxu0 %v43
    %231 = vmatprep.subr.mxu0 0.0
    %232 = vmatpush1.msra.mxu0 %v42
    %233 = vmatprep.subr.mxu0 0.0
    %234 = vmatpush2.msra.mxu0 0.0
    %235 = vmatprep.subr.mxu0 0.0
    %236 = vmatpush2.msra.mxu0 0.0
    %237 = vmatprep.subr.mxu0 0.0
    %238 = vmatpush2.msra.mxu0 0.0
    %239 = vmatprep.subr.mxu0 0.0
    %240 = vmatpush2.msra.mxu0 0.0
    %241 = vmatprep.subr.mxu0 0.0
    %242 = vmatpush2.msra.mxu0 0.0
    %243 = vmatprep.subr.mxu0 0.0
    %244 = vmatpush2.msra.mxu0 0.0
    %245 = vmatprep.subr.mxu0 0.0
    %246 = vmatpush2.msra.mxu0 0.0
    %247 = vmatprep.subr.mxu0 0.0
    %248 = vmatpush2.msra.mxu0 0.0
    %249 = vmatprep.subr.mxu0 0.0
    %250 = vmatpush2.msra.mxu0 0.0
    %251 = vmatprep.subr.mxu0 0.0
    %252 = vmatpush2.msra.mxu0 0.0
    %253 = vmatprep.subr.mxu0 0.0
    %254 = vmatpush2.msra.mxu0 0.0
    %255 = vmatprep.subr.mxu0 0.0
    %256 = vmatpush2.msra.mxu0 0.0
    %257 = vmatprep.subr.mxu0 0.0
    %258 = vmatpush2.msra.mxu0 0.0
    %259 = vmatprep.subr.mxu0 0.0
    %260 = vmatpush2.msra.mxu0 0.0
    %261 = vmatprep.subr.mxu0 0.0
    %262 = vmatpush2.msra.mxu0 0.0
    %263 = vmatprep.subr.mxu0 0.0
    %264 = vmatpush2.msra.mxu0 0.0
    %265 = vmatprep.mubr.f32.mxu0 0.0
    %266 = vmatmul.mubr.f32.gmra.mxu0 %v199
    %v267 = vpop.f32.mrf.mxu0
    %v268 = vadd.f32 0.0, %v267
    %v269 = vpop.f32.mrf.mxu0
    %270 = vdwg.mxu0
    %s271 = scalar_lea.vmem [#allocation2], 24
    %v272 = vld [vmem:[%s271] sm:$0xff]
    %v274 = vsel %vm47, %v272, 0
    %276 = vmatprep.subr.mxu0 0.0
    %277 = vmatpush1.msra.mxu0 0.0
    %278 = vmatprep.subr.mxu0 0.0
    %279 = vmatpush1.msra.mxu0 0.0
    %280 = vmatprep.subr.mxu0 0.0
    %281 = vmatpush1.msra.mxu0 0.0
    %282 = vmatprep.subr.mxu0 0.0
    %283 = vmatpush1.msra.mxu0 0.0
    %284 = vmatprep.subr.mxu0 0.0
    %285 = vmatpush1.msra.mxu0 0.0
    %286 = vmatprep.subr.mxu0 0.0
    %287 = vmatpush1.msra.mxu0 0.0
    %288 = vmatprep.subr.mxu0 0.0
    %289 = vmatpush1.msra.mxu0 0.0
    %290 = vmatprep.subr.mxu0 0.0
    %291 = vmatpush1.msra.mxu0 0.0
    %292 = vmatprep.subr.mxu0 0.0
    %293 = vmatpush1.msra.mxu0 0.0
    %294 = vmatprep.subr.mxu0 0.0
    %295 = vmatpush1.msra.mxu0 0.0
    %296 = vmatprep.subr.mxu0 0.0
    %297 = vmatpush1.msra.mxu0 0.0
    %298 = vmatprep.subr.mxu0 0.0
    %299 = vmatpush1.msra.mxu0 0.0
    %300 = vmatprep.subr.mxu0 0.0
    %301 = vmatpush1.msra.mxu0 %v45
    %302 = vmatprep.subr.mxu0 0.0
    %303 = vmatpush1.msra.mxu0 %v44
    %304 = vmatprep.subr.mxu0 0.0
    %305 = vmatpush1.msra.mxu0 %v43
    %306 = vmatprep.subr.mxu0 0.0
    %307 = vmatpush1.msra.mxu0 %v42
    %308 = vmatprep.subr.mxu0 0.0
    %309 = vmatpush2.msra.mxu0 0.0
    %310 = vmatprep.subr.mxu0 0.0
    %311 = vmatpush2.msra.mxu0 0.0
    %312 = vmatprep.subr.mxu0 0.0
    %313 = vmatpush2.msra.mxu0 0.0
    %314 = vmatprep.subr.mxu0 0.0
    %315 = vmatpush2.msra.mxu0 0.0
    %316 = vmatprep.subr.mxu0 0.0
    %317 = vmatpush2.msra.mxu0 0.0
    %318 = vmatprep.subr.mxu0 0.0
    %319 = vmatpush2.msra.mxu0 0.0
    %320 = vmatprep.subr.mxu0 0.0
    %321 = vmatpush2.msra.mxu0 0.0
    %322 = vmatprep.subr.mxu0 0.0
    %323 = vmatpush2.msra.mxu0 0.0
    %324 = vmatprep.subr.mxu0 0.0
    %325 = vmatpush2.msra.mxu0 0.0
    %326 = vmatprep.subr.mxu0 0.0
    %327 = vmatpush2.msra.mxu0 0.0
    %328 = vmatprep.subr.mxu0 0.0
    %329 = vmatpush2.msra.mxu0 0.0
    %330 = vmatprep.subr.mxu0 0.0
    %331 = vmatpush2.msra.mxu0 0.0
    %332 = vmatprep.subr.mxu0 0.0
    %333 = vmatpush2.msra.mxu0 0.0
    %334 = vmatprep.subr.mxu0 0.0
    %335 = vmatpush2.msra.mxu0 0.0
    %336 = vmatprep.subr.mxu0 0.0
    %337 = vmatpush2.msra.mxu0 0.0
    %338 = vmatprep.subr.mxu0 0.0
    %339 = vmatpush2.msra.mxu0 0.0
    %340 = vmatprep.mubr.f32.mxu0 0.0
    %341 = vmatmul.mubr.f32.gmra.mxu0 %v274
    %v342 = vpop.f32.mrf.mxu0
    %v343 = vadd.f32 0.0, %v342
    %v344 = vpop.f32.mrf.mxu0
    %345 = vdwg.mxu0
    %347 = vrot.lane.b32.xlu0 %v118, 32
    %v348 = vpop.permute.xlu0 %347
    %v350 = vmul.f32 %v118, %v348
    %352 = vrot.lane.b32.xlu0 %v350, 96
    %v353 = vpop.permute.xlu0 %352
    %v355 = vsel %vm47, %v353, 0.0
    %356 = vadd.xlane.f32.xlu0 %v355
    %v357 = vpop.xlane.xlu0 %356
    %v358 = vmul.f32 %v193, %v348
    %360 = vrot.lane.b32.xlu0 %v358, 96
    %v361 = vpop.permute.xlu0 %360
    %v363 = vsel %vm47, %v361, 0.0
    %364 = vadd.xlane.f32.xlu0 %v363
    %v365 = vpop.xlane.xlu0 %364
    %v366 = vmul.f32 %v268, %v348
    %368 = vrot.lane.b32.xlu0 %v366, 96
    %v369 = vpop.permute.xlu0 %368
    %v371 = vsel %vm47, %v369, 0.0
    %372 = vadd.xlane.f32.xlu0 %v371
    %v373 = vpop.xlane.xlu0 %372
    %v374 = vmul.f32 %v343, %v348
    %376 = vrot.lane.b32.xlu0 %v374, 96
    %v377 = vpop.permute.xlu0 %376
    %v379 = vsel %vm47, %v377, 0.0
    %380 = vadd.xlane.f32.xlu0 %v379
    %v381 = vpop.xlane.xlu0 %380
    %vm382 = vcmask 7168
    %v383 = vsel %vm382, %v357, %v365
    %vm384 = vcmask 15360
    %v385 = vsel %vm384, %v383, %v373
    %vm386 = vcmask 23552
    %v387 = vsel %vm386, %v385, %v381
    %vm388 = vcmask 31744
    %v389 = vsel %vm388, %v387, -inf
    %390 = vmax.xlane.f32.xlu0 %v389
    %v391 = vpop.xlane.xlu0 %390
    %v392 = vsub.f32 %v387, %v391
    %v393 = vmul.f32 %v392, 1.442695
    %v394 = vpow.pop %v393
    %v395 = vsel %vm388, %v394, 0.0
    %396 = vadd.xlane.f32.xlu0 %v395
    %v397 = vpop.xlane.xlu0 %396
    %v398 = vrcp.pop %v397
    %v399 = vmul.f32 %v394, %v398
    %401 = vset.pattern.permute.xlu0 0
    %402 = vperm.xlu0 %401, %v399
    %v403 = vpop.permute.xlu0 %402
    %v405 = vmul.f32 %v403, %v118
    %406 = vset.pattern.permute.xlu0 1
    %407 = vperm.xlu0 %406, %v399
    %v408 = vpop.permute.xlu0 %407
    %v410 = vmul.f32 %v408, %v193
    %v411 = vadd.f32 %v405, %v410
    %412 = vset.pattern.permute.xlu0 2
    %413 = vperm.xlu0 %412, %v399
    %v414 = vpop.permute.xlu0 %413
    %v416 = vmul.f32 %v414, %v268
    %v417 = vadd.f32 %v411, %v416
    %418 = vset.pattern.permute.xlu0 3
    %419 = vperm.xlu0 %418, %v399
    %v420 = vpop.permute.xlu0 %419
    %v422 = vmul.f32 %v420, %v343
    %v423 = vadd.f32 %v417, %v422
    %425 = vrot.lane.b32.xlu0 %v423, 64
    %v426 = vpop.permute.xlu0 %425
    %428 = vst.msk [vmem:[#allocation7] sm:$0xff] %vm47, %v426
    %429 = vst.msk [vmem:[%s3] sm:$0xff] %vm388, %v399
    // Predicated region
    $region18: #{tpu_custom_call.1} parent=1 // pred_check
      _
    $region19: #{tpu_custom_call.1} parent=1 // pred_check_branch
      %431 = sbr.rel (0) target = $region21
    $region20: #{tpu_custom_call.1} parent=1 // pred_region
      %s433 = ssub.s32 128, 128
      %434 = vsyncadd [#allocation4], %s433
      %s436 = sshll.u32 [#allocation7], 4
      %s437 = int_to_ptr.vmem [resolvable:$true] %s436
      %439 = dma.vmem_to_hbm [thread:$0]  %s437, 128, %s2, [#allocation4]
    $region21: #{tpu_custom_call.1} parent=1 // pred_fallthru
      _
    // Predicated region
    $region22: #{tpu_custom_call.1} parent=1 // pred_check
      _
    $region23: #{tpu_custom_call.1} parent=1 // pred_check_branch
      %441 = sbr.rel (0) target = $region25
    $region24: #{tpu_custom_call.1} parent=1 // pred_region
      _
    $region25: #{tpu_custom_call.1} parent=1 // pred_fallthru
      _
    // Predicated region
    $region26: #{tpu_custom_call.1} parent=1 // pred_check
      _
    $region27: #{tpu_custom_call.1} parent=1 // pred_check_branch
      %443 = sbr.rel (0) target = $region29
    $region28: #{tpu_custom_call.1} parent=1 // pred_region
      %444 = dma.done [#allocation4], 128
    $region29: #{tpu_custom_call.1} parent=1 // pred_fallthru
      _
    // Predicated region
    $region30: #{tpu_custom_call.1} parent=1 // pred_check
      _
    $region31: #{tpu_custom_call.1} parent=1 // pred_check_branch
      %446 = sbr.rel (0) target = $region33
    $region32: #{tpu_custom_call.1} parent=1 // pred_region
      _
    $region33: #{tpu_custom_call.1} parent=1 // pred_fallthru
      _
    %447 = vsyncpa [#allocation3], 1
    %448 = vsyncpa [#allocation6], 1
    %449 = vsyncpa [#allocation4], 1

</llo_original>
